<compile_context>
chip_gen: v6e
topology: v6e:2x2x1
jax: 0.10.0
libtpu: 0.0.40
codegen_flags: <defaults>
</compile_context>

<pallas_src>
import jax
import jax.numpy as jnp
from jax.experimental import pallas as pl
from jax.experimental.pallas import tpu as pltpu

_NEG_SLOPE = 0.01  # nn.LeakyReLU() default negative_slope


def _leaky_relu(x):
    return jnp.where(x >= 0, x, _NEG_SLOPE * x)


def _round_up(v, m):
    return ((v + m - 1) // m) * m


def _make_temporal_block_kernel(kernel_size, dilation, halo, halo_blk,
                                c_in, c_in_blk, c_out, use_downsample):
    has_halo = halo > 0
    needs_zero = c_in_blk != c_in   # zero the pad rows of the stacked RHS

    def kernel(*refs):
        if has_halo:
            x_ref, halo_ref, w_ref, b_ref, o_ref, win_ref, rhs_ref = refs
        else:
            x_ref, w_ref, b_ref, o_ref, rhs_ref = refs
            halo_ref = win_ref = None

        l_t = x_ref.shape[1]
        x_t = x_ref[...]                                   # (C_in, Lt)

        if has_halo:
            # Contiguous halo'd window via two lane-aligned VMEM stores:
            # the halo slab is 128-lane padded with the real halo right-aligned.
            win_ref[:, 0:halo_blk] = halo_ref[...]
            win_ref[:, halo_blk:halo_blk + l_t] = x_t
            win = win_ref[...]                             # (C_in, halo_blk + Lt)
            base = halo_blk - halo
        else:
            win, base = x_t, 0

        # Stack the K shifted tap windows along the sublane axis so the whole
        # dilated causal conv (+ folded 1x1 downsample) is a single MXU matmul.
        if needs_zero:
            rhs_ref[...] = jnp.zeros(rhs_ref.shape, rhs_ref.dtype)
        for j in range(kernel_size):
            start = base + j * dilation
            rhs_ref[j * c_in_blk:j * c_in_blk + c_in, :] = win[:, start:start + l_t]

        acc = jnp.dot(w_ref[...], rhs_ref[...],
                      preferred_element_type=jnp.float32) + b_ref[...]

        if use_downsample:
            h = _leaky_relu(acc[:c_out, :])                # conv1 path
            res = acc[c_out:, :]                           # folded 1x1 downsample
        else:
            h = _leaky_relu(acc)
            res = x_t.astype(jnp.float32)                  # identity residual

        # TODO(synk): dropout is inference-mode identity here; a training-mode
        # mask would use pltpu.prng_seed / pltpu.prng_random_bits.
        o_ref[...] = _leaky_relu(h + res).astype(o_ref.dtype)

    return kernel


def temporal_block_forward(x, conv1_v, conv1_g, conv1_b, down_w=None, down_b=None,
                           *, kernel_size, stride=1, dilation=1, padding,
                           l_tile=None, max_l_tile=4096,
                           tile_vmem_budget=20 * 1024 * 1024):
    """Fused TemporalBlock forward. x: (N, C_in, L) -> (N, C_out, L)."""
    assert x.ndim == 3
    n, c_in, l = x.shape
    c_out = conv1_v.shape[0]
    assert conv1_v.shape == (c_out, c_in, kernel_size)
    assert stride == 1  # TODO(synk): only stride=1 (standard TCN usage) implemented
    halo = dilation * (kernel_size - 1)
    # chomp(padding) after symmetric conv padding + residual add with x requires
    # the causal-TCN setting padding == dilation * (kernel_size - 1).
    assert padding == halo, "residual add requires padding == dilation*(kernel_size-1)"
    l_out = l

    use_downsample = down_w is not None
    if not use_downsample:
        assert c_in == c_out

    # weight_norm reparameterization: W = g * v / ||v||_2 (per output channel).
    v32 = conv1_v.astype(jnp.float32)
    nrm = jnp.sqrt(jnp.sum(v32 * v32, axis=(1, 2), keepdims=True))
    w1 = conv1_g.astype(jnp.float32).reshape(c_out, 1, 1) * v32 / nrm  # (C_out, C_in, K)

    # Fold the K taps (and the 1x1 downsample, as extra output rows that only
    # read the un-shifted last tap = the x tile) into one (R, K*C_in_pad) LHS.
    c_in_blk = _round_up(c_in, 8)            # sublane-aligned tap blocks in the RHS
    w_taps = jnp.transpose(w1, (0, 2, 1))                              # (C_out, K, C_in)
    w_taps = jnp.pad(w_taps, ((0, 0), (0, 0), (0, c_in_blk - c_in)))
    w_big = w_taps.reshape(c_out, kernel_size * c_in_blk)
    b_big = conv1_b.astype(jnp.float32).reshape(c_out, 1)
    if use_downsample:
        wd = down_w.astype(jnp.float32).reshape(c_out, c_in)
        w_down = jnp.zeros((c_out, kernel_size, c_in_blk), jnp.float32)
        w_down = w_down.at[:, kernel_size - 1, :c_in].set(wd)
        w_big = jnp.concatenate(
            [w_big, w_down.reshape(c_out, kernel_size * c_in_blk)], axis=0)
        b_big = jnp.concatenate(
            [b_big, down_b.astype(jnp.float32).reshape(c_out, 1)], axis=0)
    r = w_big.shape[0]
    w_big = w_big.astype(x.dtype)            # MXU inputs stay in the activation dtype

    # Lane-dense L tiling sized from a VMEM budget (bigger tiles -> closer to the
    # HBM roofline, unmasked stores); single full-extent tile when it fits.
    itemsize = jnp.dtype(x.dtype).itemsize
    if l_tile is None:
        bytes_per_col = (itemsize * (2 * c_in + 2 * c_out            # double-buffered x / out blocks
                                     + c_in + kernel_size * c_in_blk)  # win + rhs scratch
                         + 4 * r)                                    # f32 accumulator headroom
        cap = max(128, (tile_vmem_budget // bytes_per_col) // 128 * 128)
        cap = min(cap, max_l_tile)
    else:
        cap = l_tile
    if l_out <= cap:
        l_t, num_lt = l_out, 1
    else:
        assert cap % 128 == 0, "multi-tile path requires a 128-multiple L tile"
        l_t, num_lt = cap, -(-l_out // cap)

    # Tiny per-tile causal left-halo slab (zeros left of t == 0), lane-padded to
    # a 128 multiple with the real halo right-aligned so in-kernel stores stay
    # aligned. Replaces the full-array jnp.pad of x.
    args = [x]
    if halo > 0:
        halo_blk = _round_up(halo, 128)
        pieces = []
        for t in range(num_lt):
            s = t * l_t - halo
            if s >= 0:
                pieces.append(x[:, :, s:s + halo])
            elif s + halo <= 0:
                pieces.append(jnp.zeros((n, c_in, halo), x.dtype))
            else:
                pieces.append(jnp.concatenate(
                    [jnp.zeros((n, c_in, -s), x.dtype), x[:, :, 0:s + halo]], axis=2))
        halo_slab = jnp.stack(pieces, axis=1)                 # (N, num_lt, C_in, halo)
        halo_slab = jnp.pad(halo_slab,
                            ((0, 0), (0, 0), (0, 0), (halo_blk - halo, 0)))
        args.append(halo_slab)
    else:
        halo_blk = 0

    grid = (num_lt, n)   # L tiles first: feeds both v7x TensorCores even when N == 1
    in_specs = [pl.BlockSpec((None, c_in, l_t), lambda t, b: (b, 0, t))]
    if halo > 0:
        in_specs.append(
            pl.BlockSpec((None, None, c_in, halo_blk), lambda t, b: (b, t, 0, 0)))
    in_specs += [
        pl.BlockSpec((r, kernel_size * c_in_blk), lambda t, b: (0, 0)),
        pl.BlockSpec((r, 1), lambda t, b: (0, 0)),
    ]
    args += [w_big, b_big]

    scratch_shapes = []
    if halo > 0:
        scratch_shapes.append(pltpu.VMEM((c_in, halo_blk + l_t), x.dtype))
    scratch_shapes.append(pltpu.VMEM((kernel_size * c_in_blk, l_t), x.dtype))

    kernel = _make_temporal_block_kernel(kernel_size, dilation, halo, halo_blk,
                                         c_in, c_in_blk, c_out, use_downsample)

    return pl.pallas_call(
        kernel,
        out_shape=jax.ShapeDtypeStruct((n, c_out, l_out), x.dtype),
        grid_spec=pltpu.PrefetchScalarGridSpec(
            num_scalar_prefetch=0,
            grid=grid,
            in_specs=in_specs,
            out_specs=pl.BlockSpec((None, c_out, l_t), lambda t, b: (b, 0, t)),
            scratch_shapes=scratch_shapes,
        ),
        compiler_params=pltpu.CompilerParams(
            dimension_semantics=("parallel", "parallel"),
            vmem_limit_bytes=40 * 1024 * 1024),
    )(*args)


def temporal_block_reference(x, conv1_v, conv1_g, conv1_b, down_w=None, down_b=None,
                             *, kernel_size, dilation, padding):
    """Plain-JAX reference of the PyTorch forward (eval mode)."""
    n, c_in, l = x.shape
    c_out = conv1_v.shape[0]
    prec = jax.lax.Precision.HIGHEST
    v32 = conv1_v.astype(jnp.float32)
    nrm = jnp.sqrt(jnp.sum(v32 * v32, axis=(1, 2), keepdims=True))
    w1 = conv1_g.astype(jnp.float32).reshape(c_out, 1, 1) * v32 / nrm
    xp = jnp.pad(x.astype(jnp.float32), ((0, 0), (0, 0), (padding, padding)))
    l_conv = l + 2 * padding - dilation * (kernel_size - 1)
    out = jnp.zeros((n, c_out, l_conv), jnp.float32)
    for j in range(kernel_size):
        out = out + jnp.einsum("oi,nil->nol", w1[:, :, j],
                               xp[:, :, j * dilation:j * dilation + l_conv],
                               precision=prec)
    out = out + conv1_b.astype(jnp.float32).reshape(1, c_out, 1)
    out = out[:, :, :l_conv - padding]          # Chomp1d(padding)
    out = _leaky_relu(out)                      # LeakyReLU; dropout = identity (eval)
    if down_w is None:
        res = x.astype(jnp.float32)
    else:
        res = jnp.einsum("oi,nil->nol",
                         down_w.astype(jnp.float32).reshape(c_out, c_in),
                         x.astype(jnp.float32), precision=prec)
        res = res + down_b.astype(jnp.float32).reshape(1, c_out, 1)
    return _leaky_relu(out + res)


if __name__ == "__main__":
    key = jax.random.PRNGKey(0)
    keys = jax.random.split(key, 16)

    # Case 1: n_inputs != n_outputs (1x1 downsample residual), single full-L tile.
    ks, dil = 3, 1
    pad = (ks - 1) * dil
    N, C_in, C_out, L = 2, 4, 8, 16
    x = jax.random.normal(keys[0], (N, C_in, L), jnp.float32)
    v1 = 0.01 * jax.random.normal(keys[1], (C_out, C_in, ks), jnp.float32)
    g1 = 1.0 + 0.1 * jax.random.normal(keys[2], (C_out,), jnp.float32)
    b1 = 0.1 * jax.random.normal(keys[3], (C_out,), jnp.float32)
    wd = 0.01 * jax.random.normal(keys[4], (C_out, C_in, 1), jnp.float32)
    bd = 0.1 * jax.random.normal(keys[5], (C_out,), jnp.float32)

    out = jax.block_until_ready(temporal_block_forward(
        x, v1, g1, b1, wd, bd, kernel_size=ks, dilation=dil, padding=pad))
    ref = temporal_block_reference(x, v1, g1, b1, wd, bd,
                                   kernel_size=ks, dilation=dil, padding=pad)
    assert out.shape == (N, C_out, L), out.shape
    assert out.dtype == x.dtype
    assert jnp.allclose(out, ref, rtol=1e-4, atol=1e-4), "case 1 mismatch"

    # Case 2: identity residual, multi-tile L path with a ragged last tile
    # (640 = 256 + 256 + 128 valid of a 256 block; no pad / no output slice).
    N2, C2, L2 = 2, 8, 640
    x2 = jax.random.normal(keys[6], (N2, C2, L2), jnp.float32)
    v2 = 0.01 * jax.random.normal(keys[7], (C2, C2, ks), jnp.float32)
    g2 = 1.0 + 0.1 * jax.random.normal(keys[8], (C2,), jnp.float32)
    b2 = 0.1 * jax.random.normal(keys[9], (C2,), jnp.float32)
    out2 = jax.block_until_ready(temporal_block_forward(
        x2, v2, g2, b2, None, None, kernel_size=ks, dilation=dil, padding=pad,
        l_tile=256))
    ref2 = temporal_block_reference(x2, v2, g2, b2, None, None,
                                    kernel_size=ks, dilation=dil, padding=pad)
    assert out2.shape == (N2, C2, L2), out2.shape
    assert jnp.allclose(out2, ref2, rtol=1e-4, atol=1e-4), "case 2 mismatch"

    # Case 3: dilation=2, downsample residual, batch=1 (L-tile axis drives the
    # parallel grid), uneven last tile.
    ks3, dil3 = 3, 2
    pad3 = (ks3 - 1) * dil3
    N3, Ci3, Co3, L3 = 1, 4, 8, 500
    x3 = jax.random.normal(keys[10], (N3, Ci3, L3), jnp.float32)
    v3 = 0.01 * jax.random.normal(keys[11], (Co3, Ci3, ks3), jnp.float32)
    g3 = 1.0 + 0.1 * jax.random.normal(keys[12], (Co3,), jnp.float32)
    b3 = 0.1 * jax.random.normal(keys[13], (Co3,), jnp.float32)
    wd3 = 0.01 * jax.random.normal(keys[14], (Co3, Ci3, 1), jnp.float32)
    bd3 = 0.1 * jax.random.normal(keys[15], (Co3,), jnp.float32)
    out3 = jax.block_until_ready(temporal_block_forward(
        x3, v3, g3, b3, wd3, bd3, kernel_size=ks3, dilation=dil3, padding=pad3,
        l_tile=128))
    ref3 = temporal_block_reference(x3, v3, g3, b3, wd3, bd3,
                                    kernel_size=ks3, dilation=dil3, padding=pad3)
    assert out3.shape == (N3, Co3, L3), out3.shape
    assert jnp.allclose(out3, ref3, rtol=1e-4, atol=1e-4), "case 3 mismatch"

    print("KERNEL_OK")
</pallas_src>

<mosaic_0001>
module attributes {stable_mosaic.version = 11 : i64} {
  func.func @kernel(%arg0: i32, %arg1: i32, %arg2: memref<1x4x16xf32, #tpu.memory_space<vmem>>, %arg3: memref<1x1x4x128xf32, #tpu.memory_space<vmem>>, %arg4: memref<16x24xf32, #tpu.memory_space<vmem>>, %arg5: memref<16x1xf32, #tpu.memory_space<vmem>>, %arg6: memref<1x8x16xf32, #tpu.memory_space<vmem>>, %arg7: memref<4x144xf32, #tpu.memory_space<vmem>>, %arg8: memref<24x16xf32, #tpu.memory_space<vmem>>) attributes {dimension_semantics = [#tpu.dimension_semantics<parallel>, #tpu.dimension_semantics<parallel>], iteration_bounds = array<i64: 1, 2>, scalar_prefetch = 0 : i64, scratch_operands = 2 : i64, tpu.core_type = #tpu.core_type<tc>, window_params = [{transform_indices = @transform_0, window_bounds = array<i64: 1, 4, 16>}, {transform_indices = @transform_1, window_bounds = array<i64: 1, 1, 4, 128>}, {pipeline_mode = #tpu.pipeline_mode<synchronous>, transform_indices = @transform_2, window_bounds = array<i64: 16, 24>}, {pipeline_mode = #tpu.pipeline_mode<synchronous>, transform_indices = @transform_3, window_bounds = array<i64: 16, 1>}, {transform_indices = @transform_4, window_bounds = array<i64: 1, 8, 16>}]} {
    %c0 = arith.constant 0 : index
    %c0_0 = arith.constant 0 : index
    %c0_1 = arith.constant 0 : index
    %0 = vector.load %arg2[%c0, %c0_0, %c0_1] : memref<1x4x16xf32, #tpu.memory_space<vmem>>, vector<1x4x16xf32>
    %1 = vector.shape_cast %0 : vector<1x4x16xf32> to vector<4x16xf32>
    %c0_2 = arith.constant 0 : index
    %c0_3 = arith.constant 0 : index
    %c0_4 = arith.constant 0 : index
    %c0_5 = arith.constant 0 : index
    %2 = vector.load %arg3[%c0_2, %c0_3, %c0_4, %c0_5] : memref<1x1x4x128xf32, #tpu.memory_space<vmem>>, vector<1x1x4x128xf32>
    %3 = vector.shape_cast %2 : vector<1x1x4x128xf32> to vector<4x128xf32>
    %c0_6 = arith.constant 0 : index
    %c0_7 = arith.constant 0 : index
    %4 = vector.load %arg7[%c0_6, %c0_7] : memref<4x144xf32, #tpu.memory_space<vmem>>, vector<4x128xf32>
    tpu.vector_store %arg7[%c0_6, %c0_7], %3 {strides = array<i32>} : memref<4x144xf32, #tpu.memory_space<vmem>>, vector<4x128xf32>,
    %c0_8 = arith.constant 0 : index
    %c128 = arith.constant 128 : index
    %5 = vector.load %arg7[%c0_8, %c128] : memref<4x144xf32, #tpu.memory_space<vmem>>, vector<4x16xf32>
    tpu.vector_store %arg7[%c0_8, %c128], %1 {strides = array<i32>} : memref<4x144xf32, #tpu.memory_space<vmem>>, vector<4x16xf32>,
    %c0_9 = arith.constant 0 : index
    %c0_10 = arith.constant 0 : index
    %6 = vector.load %arg7[%c0_9, %c0_10] : memref<4x144xf32, #tpu.memory_space<vmem>>, vector<4x144xf32>
    %cst = arith.constant 0.000000e+00 : f32
    %7 = vector.broadcast %cst : f32 to vector<24x16xf32>
    %c0_11 = arith.constant 0 : index
    %c0_12 = arith.constant 0 : index
    %8 = vector.load %arg8[%c0_11, %c0_12] : memref<24x16xf32, #tpu.memory_space<vmem>>, vector<24x16xf32>
    tpu.vector_store %arg8[%c0_11, %c0_12], %7 {strides = array<i32>} : memref<24x16xf32, #tpu.memory_space<vmem>>, vector<24x16xf32>,
    %9 = vector.extract_strided_slice %6 {offsets = [0, 126], sizes = [4, 16], strides = [1, 1]} : vector<4x144xf32> to vector<4x16xf32>
    %c0_13 = arith.constant 0 : index
    %c0_14 = arith.constant 0 : index
    %10 = vector.load %arg8[%c0_13, %c0_14] : memref<24x16xf32, #tpu.memory_space<vmem>>, vector<4x16xf32>
    tpu.vector_store %arg8[%c0_13, %c0_14], %9 {strides = array<i32>} : memref<24x16xf32, #tpu.memory_space<vmem>>, vector<4x16xf32>,
    %11 = vector.extract_strided_slice %6 {offsets = [0, 127], sizes = [4, 16], strides = [1, 1]} : vector<4x144xf32> to vector<4x16xf32>
    %c8 = arith.constant 8 : index
    %c0_15 = arith.constant 0 : index
    %12 = vector.load %arg8[%c8, %c0_15] : memref<24x16xf32, #tpu.memory_space<vmem>>, vector<4x16xf32>
    tpu.vector_store %arg8[%c8, %c0_15], %11 {strides = array<i32>} : memref<24x16xf32, #tpu.memory_space<vmem>>, vector<4x16xf32>,
    %13 = vector.extract_strided_slice %6 {offsets = [0, 128], sizes = [4, 16], strides = [1, 1]} : vector<4x144xf32> to vector<4x16xf32>
    %c16 = arith.constant 16 : index
    %c0_16 = arith.constant 0 : index
    %14 = vector.load %arg8[%c16, %c0_16] : memref<24x16xf32, #tpu.memory_space<vmem>>, vector<4x16xf32>
    tpu.vector_store %arg8[%c16, %c0_16], %13 {strides = array<i32>} : memref<24x16xf32, #tpu.memory_space<vmem>>, vector<4x16xf32>,
    %c0_17 = arith.constant 0 : index
    %c0_18 = arith.constant 0 : index
    %15 = vector.load %arg4[%c0_17, %c0_18] : memref<16x24xf32, #tpu.memory_space<vmem>>, vector<16x24xf32>
    %c0_19 = arith.constant 0 : index
    %c0_20 = arith.constant 0 : index
    %16 = vector.load %arg8[%c0_19, %c0_20] : memref<24x16xf32, #tpu.memory_space<vmem>>, vector<24x16xf32>
    %cst_21 = arith.constant dense<0.000000e+00> : vector<16x16xf32>
    %17 = tpu.matmul %15, %16, %cst_21 {dimension_numbers = #tpu.dot_dimension_numbers<[1], [0], [0], [1], [0, 0, 1, 1], [], []>} : vector<16x24xf32>, vector<24x16xf32>, vector<16x16xf32> -> vector<16x16xf32>
    %c0_22 = arith.constant 0 : index
    %c0_23 = arith.constant 0 : index
    %18 = vector.load %arg5[%c0_22, %c0_23] : memref<16x1xf32, #tpu.memory_space<vmem>>, vector<16x1xf32>
    %19 = vector.broadcast %18 : vector<16x1xf32> to vector<16x16xf32>
    %20 = arith.addf %17, %19 : vector<16x16xf32>
    %21 = vector.extract_strided_slice %20 {offsets = [0, 0], sizes = [8, 16], strides = [1, 1]} : vector<16x16xf32> to vector<8x16xf32>
    %cst_24 = arith.constant 0.000000e+00 : f32
    %22 = vector.broadcast %cst_24 : f32 to vector<8x16xf32>
    %23 = arith.cmpf oge, %21, %22 : vector<8x16xf32>
    %cst_25 = arith.constant 0.00999999977 : f32
    %24 = vector.broadcast %cst_25 : f32 to vector<8x16xf32>
    %25 = arith.mulf %24, %21 : vector<8x16xf32>
    %26 = arith.select %23, %21, %25 : vector<8x16xi1>, vector<8x16xf32>
    %27 = vector.extract_strided_slice %20 {offsets = [8, 0], sizes = [8, 16], strides = [1, 1]} : vector<16x16xf32> to vector<8x16xf32>
    %28 = arith.addf %26, %27 : vector<8x16xf32>
    %cst_26 = arith.constant 0.000000e+00 : f32
    %29 = vector.broadcast %cst_26 : f32 to vector<8x16xf32>
    %30 = arith.cmpf oge, %28, %29 : vector<8x16xf32>
    %cst_27 = arith.constant 0.00999999977 : f32
    %31 = vector.broadcast %cst_27 : f32 to vector<8x16xf32>
    %32 = arith.mulf %31, %28 : vector<8x16xf32>
    %33 = arith.select %30, %28, %32 : vector<8x16xi1>, vector<8x16xf32>
    %c0_28 = arith.constant 0 : index
    %c0_29 = arith.constant 0 : index
    %c0_30 = arith.constant 0 : index
    %34 = vector.load %arg6[%c0_28, %c0_29, %c0_30] : memref<1x8x16xf32, #tpu.memory_space<vmem>>, vector<1x8x16xf32>
    %35 = vector.shape_cast %34 : vector<1x8x16xf32> to vector<8x16xf32>
    %36 = vector.shape_cast %33 : vector<8x16xf32> to vector<1x8x16xf32>
    tpu.vector_store %arg6[%c0_28, %c0_29, %c0_30], %36 {strides = array<i32>} : memref<1x8x16xf32, #tpu.memory_space<vmem>>, vector<1x8x16xf32>,
    return
  }
  func.func @transform_0(%arg0: i32, %arg1: i32) -> (i32, i32, i32) {
    %c0_i32 = arith.constant 0 : i32
    %c0_i32_0 = arith.constant 0 : i32
    return %arg1, %c0_i32, %arg0 : i32, i32, i32
  }
  func.func @transform_1(%arg0: i32, %arg1: i32) -> (i32, i32, i32, i32) {
    %c0_i32 = arith.constant 0 : i32
    %c0_i32_0 = arith.constant 0 : i32
    %c0_i32_1 = arith.constant 0 : i32
    return %arg1, %arg0, %c0_i32, %c0_i32_0 : i32, i32, i32, i32
  }
  func.func @transform_2(%arg0: i32, %arg1: i32) -> (i32, i32) {
    %c0_i32 = arith.constant 0 : i32
    %c0_i32_0 = arith.constant 0 : i32
    %c0_i32_1 = arith.constant 0 : i32
    return %c0_i32, %c0_i32_0 : i32, i32
  }
  func.func @transform_3(%arg0: i32, %arg1: i32) -> (i32, i32) {
    %c0_i32 = arith.constant 0 : i32
    %c0_i32_0 = arith.constant 0 : i32
    %c0_i32_1 = arith.constant 0 : i32
    return %c0_i32, %c0_i32_0 : i32, i32
  }
  func.func @transform_4(%arg0: i32, %arg1: i32) -> (i32, i32, i32) {
    %c0_i32 = arith.constant 0 : i32
    %c0_i32_0 = arith.constant 0 : i32
    return %arg1, %c0_i32, %arg0 : i32, i32, i32
  }
}

</mosaic_0001>

<llo_original>
// kernel: tpu_custom_call.1
$region0: #{tpu_custom_call.1}
  #allocation0 [shape = 'u32[]', space=smem, size = 0x4, offset = 0x4, fixed_abs, tag = 'smem constant byte address 0x4 - core index']
  #allocation1 [shape = 'u32[144,128]{1,0:T(1,128)}', space=vmem, size = 0x12000, scoped, tag = 'internal scratch']
  #allocation2 [shape = 'f32[4,144]{1,0:T(4,128)}', space=vmem, size = 0x1000, scoped, tag = 'scratch operand']
  #allocation3 [shape = 'f32[24,16]{1,0:T(8,128)}', space=vmem, size = 0x3000, scoped, tag = 'scratch operand']
  %s0 = inlined_call_operand.hbm [shape: f32[2,4,16], index: 0, kind: input, shape index: {}]
  %s1 = inlined_call_operand.hbm [shape: f32[2,1,4,128], index: 1, kind: input, shape index: {}]
  %s2 = inlined_call_operand.vmem [shape: f32[16,24], index: 2, kind: input, shape index: {}]
  %s3 = inlined_call_operand.vmem [shape: f32[16,1], index: 3, kind: input, shape index: {}]
  %s4 = inlined_call_operand.hbm [shape: f32[2,8,16], index: 4, kind: output, shape index: {}]
  %s5 = sld [smem:[#allocation0]]
  $region57: #{tpu_custom_call.1} parent=0
    _
  %s7 = ssub.s32 1, %s5
  %s8 = scalar_select 0, %s7, %s5
  $region1: #{tpu_custom_call.1} parent=0
    #allocation4 [shape = 'u8[4096]{0}', space=vmem, size = 0x1000, scoped, tag = 'input window, operand 0']
    #allocation5 [shape = 's32[2]{0}', space=sflag, size = 0x8, scoped, tag = 'scoped memory for tpu_custom_call.1']
    #allocation6 [shape = 's32[2]{0}', space=sflag, size = 0x8, scoped, tag = 'scoped memory for tpu_custom_call.1']
    #allocation7 [shape = 'u8[4096]{0}', space=vmem, size = 0x1000, scoped, tag = 'input window, operand 1']
    #allocation8 [shape = 's32[2]{0}', space=sflag, size = 0x8, scoped, tag = 'scoped memory for tpu_custom_call.1']
    #allocation9 [shape = 'u8[8192]{0}', space=vmem, size = 0x2000, scoped, tag = 'output window, operand 0']
    %9 = vsyncpa [#allocation5], 0
    %s10 = scalar_lea.sflag [#allocation5], 1
    %11 = vsyncpa %s10, 0
    %12 = vsyncpa [#allocation8], 0
    %s13 = scalar_lea.sflag [#allocation8], 1
    %14 = vsyncpa %s13, 0
    %15 = vsyncpa [#allocation6], 0
    %s16 = scalar_lea.sflag [#allocation6], 1
    %17 = vsyncpa %s16, 0
    loop: start=0, step=1, limit=4
    $region2: #{tpu_custom_call.1} parent=1 // loop_pre_header
      _
    $region3: #{tpu_custom_call.1} parent=1 // loop_header
      %s19 = sphi 0, %s23
      %p20 = scmp.ge.s32.totalorder %s19, 4
      %s26 = sphi 0, %s38
      %s27 = sphi 0, %s34
      %s28 = sphi 0, %s26
      %s29 = sphi 0, %s27
      %s30 = sphi 0, %s28
      %s31 = sphi 0, %s29
      %s43 = sphi 0, %s45
      %s46 = sphi 0, %s43
      %s47 = sphi 0, %s46
      %s63 = sphi 0, %s47
      %s71 = sphi 0, %s73
      %s74 = sphi 0, %s71
      %s75 = sphi 0, %s74
      %s91 = sphi 0, %s75
      %s95 = sphi 0, %s95
      %s97 = sphi 0, %s95
      %s98 = sphi 0, %s97
      %s112 = sphi 0, %s98
      %s116 = sphi 0, %s116
      %s118 = sphi 0, %s116
      %s119 = sphi 0, %s118
      %s133 = sphi 0, %s119
      %s141 = sphi 0, %s143
      %s144 = sphi 0, %s141
      %s145 = sphi 0, %s144
      %s161 = sphi 0, %s145
    $region4: #{tpu_custom_call.1} parent=1 // loop_header_branch
      %22 = sbr.rel (%p20) target = $region8
    $region5: #{tpu_custom_call.1} parent=1 // loop_body
      %s24 = ssub.s32 %s19, 1
      %s25 = ssub.s32 %s19, 2
      %s32 = sadd.s32 1, %s27
      %p33 = scmp.ge.s32.totalorder %s32, 2
      %s34 = scalar_select %p33, 0, %s32
      %s35 = sadd.s32 1, %s26
      %s36 = scalar_select %p33, %s35, %s26
      %p37 = scmp.ge.s32.totalorder %s36, 1
      %s38 = scalar_select %p37, 0, %s36
      %s39 = ssub.s32 %s27, %s34
      %s40 = ssub.s32 %s26, %s38
      %s41 = sor.u32 %s39, %s40
      %p42 = scmp.eq.s32.totalorder %s41, 0
      %s44 = sadd.s32 %s43, 1
      %s45 = scalar_select %p42, %s43, %s44
      %p48 = pneg %p42
      %p49 = scmp.eq.s32.totalorder %s19, 1
      %p50 = por %p48, %p49
      %p51 = scmp.ne.s32.totalorder %s43, %s46
      %p52 = scmp.eq.s32.totalorder %s19, 0
      %p53 = por %p51, %p52
      %p54 = scmp.ne.s32.totalorder %s43, %s46
      %p55 = scmp.eq.s32.totalorder %s24, 1
      %p56 = por %p54, %p55
      %p57 = scmp.ne.s32.totalorder %s46, %s47
      %p58 = scmp.eq.s32.totalorder %s24, 0
      %p59 = por %p57, %p58
      %p60 = scmp.ne.s32.totalorder %s46, %s47
      %p61 = scmp.eq.s32.totalorder %s25, 1
      %p62 = por %p60, %p61
      %p64 = scmp.ne.s32.totalorder %s47, %s63
      %p65 = scmp.eq.s32.totalorder %s25, 0
      %p66 = por %p64, %p65
      %s67 = ssub.s32 %s27, %s34
      %s68 = ssub.s32 %s26, %s38
      %s69 = sor.u32 %s67, %s68
      %p70 = scmp.eq.s32.totalorder %s69, 0
      %s72 = sadd.s32 %s71, 1
      %s73 = scalar_select %p70, %s71, %s72
      %p76 = pneg %p70
      %p77 = scmp.eq.s32.totalorder %s19, 1
      %p78 = por %p76, %p77
      %p79 = scmp.ne.s32.totalorder %s71, %s74
      %p80 = scmp.eq.s32.totalorder %s19, 0
      %p81 = por %p79, %p80
      %p82 = scmp.ne.s32.totalorder %s71, %s74
      %p83 = scmp.eq.s32.totalorder %s24, 1
      %p84 = por %p82, %p83
      %p85 = scmp.ne.s32.totalorder %s74, %s75
      %p86 = scmp.eq.s32.totalorder %s24, 0
      %p87 = por %p85, %p86
      %p88 = scmp.ne.s32.totalorder %s74, %s75
      %p89 = scmp.eq.s32.totalorder %s25, 1
      %p90 = por %p88, %p89
      %p92 = scmp.ne.s32.totalorder %s75, %s91
      %p93 = scmp.eq.s32.totalorder %s25, 0
      %p94 = por %p92, %p93
      %s96 = sadd.s32 %s95, 1
      %p99 = scmp.eq.s32.totalorder %s19, 1
      %p100 = scmp.ne.s32.totalorder %s95, %s97
      %p101 = scmp.eq.s32.totalorder %s19, 0
      %p102 = por %p100, %p101
      %p103 = scmp.ne.s32.totalorder %s95, %s97
      %p104 = scmp.eq.s32.totalorder %s24, 1
      %p105 = por %p103, %p104
      %p106 = scmp.ne.s32.totalorder %s97, %s98
      %p107 = scmp.eq.s32.totalorder %s24, 0
      %p108 = por %p106, %p107
      %p109 = scmp.ne.s32.totalorder %s97, %s98
      %p110 = scmp.eq.s32.totalorder %s25, 1
      %p111 = por %p109, %p110
      %p113 = scmp.ne.s32.totalorder %s98, %s112
      %p114 = scmp.eq.s32.totalorder %s25, 0
      %p115 = por %p113, %p114
      %s117 = sadd.s32 %s116, 1
      %p120 = scmp.eq.s32.totalorder %s19, 1
      %p121 = scmp.ne.s32.totalorder %s116, %s118
      %p122 = scmp.eq.s32.totalorder %s19, 0
      %p123 = por %p121, %p122
      %p124 = scmp.ne.s32.totalorder %s116, %s118
      %p125 = scmp.eq.s32.totalorder %s24, 1
      %p126 = por %p124, %p125
      %p127 = scmp.ne.s32.totalorder %s118, %s119
      %p128 = scmp.eq.s32.totalorder %s24, 0
      %p129 = por %p127, %p128
      %p130 = scmp.ne.s32.totalorder %s118, %s119
      %p131 = scmp.eq.s32.totalorder %s25, 1
      %p132 = por %p130, %p131
      %p134 = scmp.ne.s32.totalorder %s119, %s133
      %p135 = scmp.eq.s32.totalorder %s25, 0
      %p136 = por %p134, %p135
      %s137 = ssub.s32 %s27, %s34
      %s138 = ssub.s32 %s26, %s38
      %s139 = sor.u32 %s137, %s138
      %p140 = scmp.eq.s32.totalorder %s139, 0
      %s142 = sadd.s32 %s141, 1
      %s143 = scalar_select %p140, %s141, %s142
      %p146 = pneg %p140
      %p147 = scmp.eq.s32.totalorder %s19, 1
      %p148 = por %p146, %p147
      %p149 = scmp.ne.s32.totalorder %s141, %s144
      %p150 = scmp.eq.s32.totalorder %s19, 0
      %p151 = por %p149, %p150
      %p152 = scmp.ne.s32.totalorder %s141, %s144
      %p153 = scmp.eq.s32.totalorder %s24, 1
      %p154 = por %p152, %p153
      %p155 = scmp.ne.s32.totalorder %s144, %s145
      %p156 = scmp.eq.s32.totalorder %s24, 0
      %p157 = por %p155, %p156
      %p158 = scmp.ne.s32.totalorder %s144, %s145
      %p159 = scmp.eq.s32.totalorder %s25, 1
      %p160 = por %p158, %p159
      %p162 = scmp.ne.s32.totalorder %s145, %s161
      %p163 = scmp.eq.s32.totalorder %s25, 0
      %p164 = por %p162, %p163
      %p165 = scmp.le.s32.totalorder 1, %s19
      %p166 = scmp.lt.s32.totalorder %s19, 3
      %p167 = pnand %p165, %p166
      %p168 = pneg %p167
      // Predicated region
      $region9: #{tpu_custom_call.1} parent=5 // pred_check
        _
      $region10: #{tpu_custom_call.1} parent=5 // pred_check_branch
        %170 = sbr.rel (%p167) target = $region12
      $region11: #{tpu_custom_call.1} parent=5 // pred_region
        %s171 = ssub.s32 %s19, 1
        // Predicated region
        $region13: #{tpu_custom_call.1} parent=11 // pred_check
          %p172 = pneg %p108
        $region14: #{tpu_custom_call.1} parent=11 // pred_check_branch
          %174 = sbr.rel (%p172) target = $region16
        $region15: #{tpu_custom_call.1} parent=11 // pred_region
          _
        $region16: #{tpu_custom_call.1} parent=11 // pred_fallthru
          _
        // Predicated region
        $region17: #{tpu_custom_call.1} parent=11 // pred_check
          %p175 = pneg %p129
        $region18: #{tpu_custom_call.1} parent=11 // pred_check_branch
          %177 = sbr.rel (%p175) target = $region20
        $region19: #{tpu_custom_call.1} parent=11 // pred_region
          _
        $region20: #{tpu_custom_call.1} parent=11 // pred_fallthru
          _
      $region12: #{tpu_custom_call.1} parent=5 // pred_fallthru
        _
      %p178 = scmp.lt.s32.totalorder %s19, 2
      // Predicated region
      $region21: #{tpu_custom_call.1} parent=5 // pred_check
        %p179 = pneg %p178
      $region22: #{tpu_custom_call.1} parent=5 // pred_check_branch
        %181 = sbr.rel (%p179) target = $region24
      $region23: #{tpu_custom_call.1} parent=5 // pred_region
        // Predicated region
        $region25: #{tpu_custom_call.1} parent=23 // pred_check
          %p182 = pneg %p53
        $region26: #{tpu_custom_call.1} parent=23 // pred_check_branch
          %184 = sbr.rel (%p182) target = $region28
        $region27: #{tpu_custom_call.1} parent=23 // pred_region
          %s185 = sand.u32 %s43, 1
          %s186 = scalar_lea.sflag [#allocation5], %s185
          %s187 = sand.u32 %s43, 1
          %s188 = smul.addr %s187, 4
          %s189 = scalar_lea.vmem [#allocation4], %s188
          %s191 = ssub.s32 64, 64
          %192 = vsyncadd %s186, %s191
          %s193 = sadd.s32 %s26, %s27
          %s194 = smul.addr %s193, 64
          %s195 = scalar_lea.hbm %s0, %s194
          %s197 = sshll.u32 %s189, 4
          %s198 = int_to_ptr.vmem [resolvable:$true] %s197
          %200 = dma.hbm_to_vmem [thread:$0]  %s195, 64, %s198, %s186
        $region28: #{tpu_custom_call.1} parent=23 // pred_fallthru
          _
        // Predicated region
        $region29: #{tpu_custom_call.1} parent=23 // pred_check
          %p201 = pneg %p81
        $region30: #{tpu_custom_call.1} parent=23 // pred_check_branch
          %203 = sbr.rel (%p201) target = $region32
        $region31: #{tpu_custom_call.1} parent=23 // pred_region
          %s204 = sand.u32 %s71, 1
          %s205 = scalar_lea.sflag [#allocation8], %s204
          %s206 = sand.u32 %s71, 1
          %s207 = smul.addr %s206, 4
          %s208 = scalar_lea.vmem [#allocation7], %s207
          %s210 = ssub.s32 64, 64
          %211 = vsyncadd %s205, %s210
          %s212 = sadd.s32 %s26, %s27
          %s213 = smul.addr %s212, 64
          %s214 = scalar_lea.hbm %s1, %s213
          %s216 = sshll.u32 %s208, 4
          %s217 = int_to_ptr.vmem [resolvable:$true] %s216
          %219 = dma.hbm_to_vmem [thread:$0]  %s214, 64, %s217, %s205
        $region32: #{tpu_custom_call.1} parent=23 // pred_fallthru
          _
      $region24: #{tpu_custom_call.1} parent=5 // pred_fallthru
        _
      %p220 = scmp.le.s32.totalorder 1, %s19
      %p221 = scmp.lt.s32.totalorder %s19, 3
      %p222 = pnand %p220, %p221
      %p223 = pneg %p222
      // Predicated region
      $region33: #{tpu_custom_call.1} parent=5 // pred_check
        _
      $region34: #{tpu_custom_call.1} parent=5 // pred_check_branch
        %225 = sbr.rel (%p222) target = $region36
      $region35: #{tpu_custom_call.1} parent=5 // pred_region
        %s226 = ssub.s32 %s19, 1
        %s227 = sand.u32 %s46, 1
        %s228 = scalar_lea.sflag [#allocation5], %s227
        %s229 = sand.u32 %s46, 1
        %s230 = smul.addr %s229, 4
        %s231 = scalar_lea.vmem [#allocation4], %s230
        // Predicated region
        $region37: #{tpu_custom_call.1} parent=35 // pred_check
          %p232 = pneg %p59
        $region38: #{tpu_custom_call.1} parent=35 // pred_check_branch
          %234 = sbr.rel (%p232) target = $region40
        $region39: #{tpu_custom_call.1} parent=35 // pred_region
          %235 = dma.done %s228, 64
        $region40: #{tpu_custom_call.1} parent=35 // pred_fallthru
          _
        %s236 = sand.u32 %s74, 1
        %s237 = scalar_lea.sflag [#allocation8], %s236
        %s238 = sand.u32 %s74, 1
        %s239 = smul.addr %s238, 4
        %s240 = scalar_lea.vmem [#allocation7], %s239
        // Predicated region
        $region41: #{tpu_custom_call.1} parent=35 // pred_check
          %p241 = pneg %p87
        $region42: #{tpu_custom_call.1} parent=35 // pred_check_branch
          %243 = sbr.rel (%p241) target = $region44
        $region43: #{tpu_custom_call.1} parent=35 // pred_region
          %244 = dma.done %s237, 64
        $region44: #{tpu_custom_call.1} parent=35 // pred_fallthru
          _
        %s245 = sand.u32 %s46, 1
        %s246 = scalar_lea.sflag [#allocation5], %s245
        %s247 = sand.u32 %s46, 1
        %s248 = smul.addr %s247, 4
        %s249 = scalar_lea.vmem [#allocation4], %s248
        %p250 = pneg %p59
        %p251 = pneg %p56
        %s252 = sand.u32 %s74, 1
        %s253 = scalar_lea.sflag [#allocation8], %s252
        %s254 = sand.u32 %s74, 1
        %s255 = smul.addr %s254, 4
        %s256 = scalar_lea.vmem [#allocation7], %s255
        %p257 = pneg %p87
        %p258 = pneg %p84
        %p259 = pneg %p108
        %p260 = pneg %p105
        %p261 = pneg %p129
        %p262 = pneg %p126
        %p263 = pneg %p157
        %p264 = pneg %p154
        %s265 = sand.u32 %s144, 1
        %s266 = scalar_lea.sflag [#allocation6], %s265
        %s267 = sand.u32 %s144, 1
        %s268 = smul.addr %s267, 8
        %s269 = scalar_lea.vmem [#allocation9], %s268
        %v270 = vld [vmem:[%s231] sm:$0xf]
        %v271 = vld [vmem:[%s240] sm:$0xf]
        %272 = vst [vmem:[#allocation2] sm:$0xf] %v271
        %vm273 = vcmask 125952
        %274 = vst.msk [vmem:[#allocation2 + $0x4] sm:$0xf] %vm273, %v270
        %v275 = vld [vmem:[#allocation2] sm:$0xff]
        %vm276 = vcmask 130048
        %277 = vst.msk [vmem:[#allocation3] sm:$0xff] %vm276, 0.0
        %278 = vst.msk [vmem:[#allocation3 + $0x8] sm:$0xff] %vm276, 0.0
        %279 = vst.msk [vmem:[#allocation3 + $0x10] sm:$0xff] %vm276, 0.0
        %v281 = vcombine.high %v275, %v275
        %282 = vrot.lane.b32.xlu0 %v275, 2
        %v283 = vpop.permute.xlu0 %282
        %284 = vrot.lane.b32.xlu0 %v281, 2
        %v285 = vpop.permute.xlu0 %284
        %vm286 = vcmask 15360
        %v287 = vsel %vm286, %v283, %v285
        %289 = vst.msk [vmem:[#allocation3] sm:$0xf] %vm273, %v287
        %290 = vrot.lane.b32.xlu0 %v275, 1
        %v291 = vpop.permute.xlu0 %290
        %292 = vrot.lane.b32.xlu0 %v281, 1
        %v293 = vpop.permute.xlu0 %292
        %vm294 = vcmask 7168
        %v295 = vsel %vm294, %v291, %v293
        %297 = vst.msk [vmem:[#allocation3 + $0x8] sm:$0xf] %vm273, %v295
        %299 = vst.msk [vmem:[#allocation3 + $0x10] sm:$0xf] %vm273, %v281
        %v300 = vld [vmem:[%s2] sm:$0xff]
        %v301 = vld [vmem:[%s2 + $0x8] sm:$0xff]
        %v302 = vld [vmem:[#allocation3] sm:$0xff]
        %v303 = vld [vmem:[#allocation3 + $0x8] sm:$0xff]
        %v304 = vld [vmem:[#allocation3 + $0x10] sm:$0xff]
        %v305 = vld [vmem:[%s3] sm:$0xff]
        %v306 = vld [vmem:[%s3 + $0x8] sm:$0xff]
        %308 = vset.pattern.permute.xlu0 0
        %309 = vperm.xlu0 %308, %v305
        %v310 = vpop.permute.xlu0 %309
        %313 = vset.pattern.permute.xlu0 0
        %314 = vperm.xlu0 %313, %v306
        %v315 = vpop.permute.xlu0 %314
        %vm317 = vcmask 195584
        %v319 = vsel %vm317, %v300, 0
        %v322 = vsel %vm317, %v301, 0
        %324 = vmatprep.subr.mxu0 0.0
        %325 = vmatpush1.msra.mxu0 0.0
        %326 = vmatprep.subr.mxu0 0.0
        %327 = vmatpush1.msra.mxu0 0.0
        %328 = vmatprep.subr.mxu0 0.0
        %329 = vmatpush1.msra.mxu0 0.0
        %330 = vmatprep.subr.mxu0 0.0
        %331 = vmatpush1.msra.mxu0 0.0
        %332 = vmatprep.subr.mxu0 0.0
        %333 = vmatpush1.msra.mxu0 0.0
        %334 = vmatprep.subr.mxu0 0.0
        %335 = vmatpush1.msra.mxu0 0.0
        %336 = vmatprep.subr.mxu0 0.0
        %337 = vmatpush1.msra.mxu0 0.0
        %338 = vmatprep.subr.mxu0 0.0
        %339 = vmatpush1.msra.mxu0 0.0
        %340 = vmatprep.subr.mxu0 0.0
        %341 = vmatpush1.msra.mxu0 0.0
        %342 = vmatprep.subr.mxu0 0.0
        %343 = vmatpush1.msra.mxu0 0.0
        %344 = vmatprep.subr.mxu0 0.0
        %345 = vmatpush1.msra.mxu0 0.0
        %346 = vmatprep.subr.mxu0 0.0
        %347 = vmatpush1.msra.mxu0 0.0
        %348 = vmatprep.subr.mxu0 0.0
        %349 = vmatpush1.msra.mxu0 0.0
        %350 = vmatprep.subr.mxu0 0.0
        %351 = vmatpush1.msra.mxu0 %v304
        %352 = vmatprep.subr.mxu0 0.0
        %353 = vmatpush1.msra.mxu0 %v303
        %354 = vmatprep.subr.mxu0 0.0
        %355 = vmatpush1.msra.mxu0 %v302
        %356 = vmatprep.subr.mxu0 0.0
        %357 = vmatpush2.msra.mxu0 0.0
        %358 = vmatprep.subr.mxu0 0.0
        %359 = vmatpush2.msra.mxu0 0.0
        %360 = vmatprep.subr.mxu0 0.0
        %361 = vmatpush2.msra.mxu0 0.0
        %362 = vmatprep.subr.mxu0 0.0
        %363 = vmatpush2.msra.mxu0 0.0
        %364 = vmatprep.subr.mxu0 0.0
        %365 = vmatpush2.msra.mxu0 0.0
        %366 = vmatprep.subr.mxu0 0.0
        %367 = vmatpush2.msra.mxu0 0.0
        %368 = vmatprep.subr.mxu0 0.0
        %369 = vmatpush2.msra.mxu0 0.0
        %370 = vmatprep.subr.mxu0 0.0
        %371 = vmatpush2.msra.mxu0 0.0
        %372 = vmatprep.subr.mxu0 0.0
        %373 = vmatpush2.msra.mxu0 0.0
        %374 = vmatprep.subr.mxu0 0.0
        %375 = vmatpush2.msra.mxu0 0.0
        %376 = vmatprep.subr.mxu0 0.0
        %377 = vmatpush2.msra.mxu0 0.0
        %378 = vmatprep.subr.mxu0 0.0
        %379 = vmatpush2.msra.mxu0 0.0
        %380 = vmatprep.subr.mxu0 0.0
        %381 = vmatpush2.msra.mxu0 0.0
        %382 = vmatprep.subr.mxu0 0.0
        %383 = vmatpush2.msra.mxu0 0.0
        %384 = vmatprep.subr.mxu0 0.0
        %385 = vmatpush2.msra.mxu0 0.0
        %386 = vmatprep.subr.mxu0 0.0
        %387 = vmatpush2.msra.mxu0 0.0
        %388 = vmatprep.mubr.f32.mxu0 0.0
        %389 = vmatmul.mubr.f32.gmra.mxu0 %v319
        %v390 = vpop.f32.mrf.mxu0
        %v391 = vadd.f32 %v310, %v390
        %v392 = vpop.f32.mrf.mxu0
        %393 = vmatprep.mubr.f32.mxu0 0.0
        %394 = vmatmul.mubr.f32.gmra.mxu0 %v322
        %v395 = vpop.f32.mrf.mxu0
        %v396 = vadd.f32 %v315, %v395
        %v397 = vpop.f32.mrf.mxu0
        %398 = vdwg.mxu0
        %vm399 = vcmp.ge.f32.partialorder %v391, 0.0
        %v400 = vmul.f32 %v391, 0.01
        %v401 = vsel %vm399, %v391, %v400
        %v402 = vadd.f32 %v401, %v396
        %vm403 = vcmp.ge.f32.partialorder %v402, 0.0
        %v404 = vmul.f32 %v402, 0.01
        %v405 = vsel %vm403, %v402, %v404
        %406 = vst.msk [vmem:[%s269] sm:$0xff] %vm276, %v405
        %s407 = sand.u32 %s144, 1
        %s408 = scalar_lea.sflag [#allocation6], %s407
        %s409 = sand.u32 %s144, 1
        %s410 = smul.addr %s409, 8
        %s411 = scalar_lea.vmem [#allocation9], %s410
        // Predicated region
        $region45: #{tpu_custom_call.1} parent=35 // pred_check
          %p412 = pneg %p154
        $region46: #{tpu_custom_call.1} parent=35 // pred_check_branch
          %414 = sbr.rel (%p412) target = $region48
        $region47: #{tpu_custom_call.1} parent=35 // pred_region
          %s416 = ssub.s32 128, 128
          %417 = vsyncadd %s408, %s416
          %s418 = sadd.s32 %s28, %s29
          %s419 = smul.addr %s418, 128
          %s420 = scalar_lea.hbm %s4, %s419
          %s422 = sshll.u32 %s411, 4
          %s423 = int_to_ptr.vmem [resolvable:$true] %s422
          %425 = dma.vmem_to_hbm [thread:$0]  %s423, 128, %s420, %s408
        $region48: #{tpu_custom_call.1} parent=35 // pred_fallthru
          _
      $region36: #{tpu_custom_call.1} parent=5 // pred_fallthru
        _
      %p426 = scmp.le.s32.totalorder 2, %s19
      // Predicated region
      $region49: #{tpu_custom_call.1} parent=5 // pred_check
        %p427 = pneg %p426
      $region50: #{tpu_custom_call.1} parent=5 // pred_check_branch
        %429 = sbr.rel (%p427) target = $region52
      $region51: #{tpu_custom_call.1} parent=5 // pred_region
        %s430 = ssub.s32 %s19, 2
        // Predicated region
        $region53: #{tpu_custom_call.1} parent=51 // pred_check
          %p431 = pneg %p160
        $region54: #{tpu_custom_call.1} parent=51 // pred_check_branch
          %433 = sbr.rel (%p431) target = $region56
        $region55: #{tpu_custom_call.1} parent=51 // pred_region
          %s434 = sand.u32 %s145, 1
          %s435 = scalar_lea.sflag [#allocation6], %s434
          %s436 = sand.u32 %s145, 1
          %s437 = smul.addr %s436, 8
          %s438 = scalar_lea.vmem [#allocation9], %s437
          %439 = dma.done %s435, 128
        $region56: #{tpu_custom_call.1} parent=51 // pred_fallthru
          _
      $region52: #{tpu_custom_call.1} parent=5 // pred_fallthru
        _
    $region6: #{tpu_custom_call.1} parent=1 // loop_footer
      %s23 = sadd.s32 1, %s19
    $region7: #{tpu_custom_call.1} parent=1 // loop_footer_branch
      %18 = sbr.rel target = $region3
    $region8: #{tpu_custom_call.1} parent=1 // loop_exit
      _
    %440 = vsyncpa [#allocation5], 1
    %s441 = scalar_lea.sflag [#allocation5], 1
    %442 = vsyncpa %s441, 1
    %443 = vsyncpa [#allocation8], 1
    %s444 = scalar_lea.sflag [#allocation8], 1
    %445 = vsyncpa %s444, 1
    %446 = vsyncpa [#allocation6], 1
    %s447 = scalar_lea.sflag [#allocation6], 1
    %448 = vsyncpa %s447, 1

</llo_original>
